<compile_context>
chip_gen: v7x
topology: tpu7x:2x2x1
jax: 0.10.0
libtpu: 0.0.40
codegen_flags: <defaults>
</compile_context>

<pallas_src>
import functools

import jax
import jax.numpy as jnp
from jax.experimental import pallas as pl
from jax.experimental.pallas import tpu as pltpu


def _onehot_gather_kernel(idx_ref, table_ref, out_ref, *, pack, v_pad, v_max):
    """idx_ref:   (rows, pack) int32 tile in VMEM
       table_ref: (pack*v_pad, lane) f32 block-diagonal replicated table (resident)
       out_ref:   (rows, lane) f32 lane-dense output tile."""
    rows = out_ref.shape[0]
    k_dim = table_ref.shape[0]

    idx = jnp.clip(idx_ref[...], 0, v_max)                      # (rows, pack)
    k_iota = jax.lax.broadcasted_iota(jnp.int32, (rows, k_dim), 1)

    # One 0/1 hit per diagonal block j at position j*v_pad + idx[:, j].
    onehot = jnp.zeros((rows, k_dim), dtype=table_ref.dtype)
    for j in range(pack):                                        # static unroll
        onehot = onehot + (k_iota == (idx[:, j:j + 1] + j * v_pad)
                           ).astype(table_ref.dtype)

    out_ref[...] = jnp.dot(onehot, table_ref[...],
                           preferred_element_type=jnp.float32
                           ).astype(out_ref.dtype)


def amino_acid_encode(indices, embedding_matrix, *, token_tile=2048,
                      min_pallas_tokens=1024, force_pallas=False):
    """indices: (B, S) int, embedding_matrix: (V, D) f32 -> (B, S, D) f32."""
    indices = jnp.asarray(indices, dtype=jnp.int32)
    emb = jnp.asarray(embedding_matrix, dtype=jnp.float32)
    B, S = indices.shape
    V, D = emb.shape
    n = B * S

    if (not force_pallas) and n < min_pallas_tokens:
        # Tiny inputs: the pallas_call fixed cost dwarfs a sub-microsecond
        # gather; XLA's native gather wins outright.
        return emb[jnp.clip(indices, 0, V - 1)]

    # Pack `pack` tokens into one 128-lane output row when D divides 128;
    # otherwise fall back to padding D up to a lane multiple (pack = 1).
    if D <= 128 and 128 % D == 0:
        pack = 128 // D
        lane = pack * D                                  # == 128, lane-dense
        v_pad = max(V, 128 // pack)                      # K == 128 when V small
        v_pad = ((v_pad + 7) // 8) * 8
    else:
        pack = 1
        lane = ((D + 127) // 128) * 128
        v_pad = ((V + 7) // 8) * 8
    k_dim = pack * v_pad

    # Block-diagonal replicated table: block j holds emb at rows
    # [j*v_pad, j*v_pad + V) and lanes [j*D, (j+1)*D); zeros elsewhere.
    table = jnp.zeros((k_dim, lane), dtype=jnp.float32)
    for j in range(pack):
        table = table.at[j * v_pad:j * v_pad + V, j * D:j * D + D].set(emb)

    # Tile the packed token-row axis.
    n_rows = -(-n // pack)                               # ceil(n / pack)
    rt = max(8, min(token_tile // pack, ((n_rows + 7) // 8) * 8))
    rt = (rt // 8) * 8
    n_rows_pad = ((n_rows + rt - 1) // rt) * rt
    idx_flat = jnp.pad(indices.reshape(-1), (0, n_rows_pad * pack - n))
    idx2d = idx_flat.reshape(n_rows_pad, pack)

    kernel = functools.partial(_onehot_gather_kernel,
                               pack=pack, v_pad=v_pad, v_max=V - 1)

    out = pl.pallas_call(
        kernel,
        out_shape=jax.ShapeDtypeStruct((n_rows_pad, lane), jnp.float32),
        grid=(n_rows_pad // rt,),
        in_specs=[
            # Per-tile indices (plain VMEM input; scales to any B*S).
            pl.BlockSpec((rt, pack), lambda i: (i, 0)),
            # Full table, same block every step -> VMEM resident.
            pl.BlockSpec((k_dim, lane), lambda i: (0, 0)),
        ],
        out_specs=pl.BlockSpec((rt, lane), lambda i: (i, 0)),
        compiler_params=pltpu.CompilerParams(
            dimension_semantics=("parallel",)),
    )(idx2d, table)

    # Undo packing / padding (layout plumbing outside the kernel).
    if pack > 1:
        out = out.reshape(n_rows_pad * pack, D)
    else:
        out = out[:, :D]
    return out[:n].reshape(B, S, D)


if __name__ == "__main__":
    key = jax.random.PRNGKey(0)
    k_emb, k_idx = jax.random.split(key)

    # Module-consistent small shapes: 21 amino acids, encoding dim 32,
    # batch=2, seq_len=8.
    V, D = 21, 32
    B, S = 2, 8
    embedding_matrix = jax.random.normal(k_emb, (V, D), dtype=jnp.float32)
    indices = jax.random.randint(k_idx, (B, S), 0, V, dtype=jnp.int32)
    ref = embedding_matrix[indices]

    # 1) Force the Pallas kernel even at the module's nominal (tiny) shapes.
    out = jax.block_until_ready(
        amino_acid_encode(indices, embedding_matrix, force_pallas=True))
    assert out.shape == (B, S, D), out.shape
    assert jnp.allclose(out, ref, atol=1e-5, rtol=1e-5), "mismatch (forced kernel)"

    # 2) Larger shape that takes the Pallas path naturally (multiple grid steps).
    B2, S2 = 8, 512
    indices2 = jax.random.randint(jax.random.PRNGKey(1), (B2, S2), 0, V,
                                  dtype=jnp.int32)
    out2 = jax.block_until_ready(amino_acid_encode(indices2, embedding_matrix))
    ref2 = embedding_matrix[indices2]
    assert out2.shape == (B2, S2, D), out2.shape
    assert jnp.allclose(out2, ref2, atol=1e-5, rtol=1e-5), "mismatch (large)"

    # 3) Small-n fallback path (pure XLA gather).
    out3 = jax.block_until_ready(amino_acid_encode(indices, embedding_matrix))
    assert jnp.array_equal(out3, ref), "mismatch (fallback)"

    print("KERNEL_OK")
</pallas_src>

<mosaic_0001>
module attributes {stable_mosaic.version = 11 : i64} {
  func.func @_onehot_gather_kernel(%arg0: i32, %arg1: memref<8x4xi32, #tpu.memory_space<vmem>>, %arg2: memref<128x128xf32, #tpu.memory_space<vmem>>, %arg3: memref<8x128xf32, #tpu.memory_space<vmem>>) attributes {dimension_semantics = [#tpu.dimension_semantics<parallel>], iteration_bounds = array<i64: 1>, scalar_prefetch = 0 : i64, scratch_operands = 0 : i64, tpu.core_type = #tpu.core_type<tc>, window_params = [{transform_indices = @transform_0, window_bounds = array<i64: 8, 4>}, {pipeline_mode = #tpu.pipeline_mode<synchronous>, transform_indices = @transform_1, window_bounds = array<i64: 128, 128>}, {transform_indices = @transform_2, window_bounds = array<i64: 8, 128>}]} {
    %c0 = arith.constant 0 : index
    %c0_0 = arith.constant 0 : index
    %0 = vector.load %arg1[%c0, %c0_0] : memref<8x4xi32, #tpu.memory_space<vmem>>, vector<8x4xi32>
    %c0_i32 = arith.constant 0 : i32
    %c20_i32 = arith.constant 20 : i32
    %1 = vector.broadcast %c0_i32 : i32 to vector<8x4xi32>
    %2 = arith.maxsi %1, %0 : vector<8x4xi32>
    %3 = vector.broadcast %c20_i32 : i32 to vector<8x4xi32>
    %4 = arith.minsi %3, %2 : vector<8x4xi32>
    %5 = tpu.iota {dimensions = array<i32: 1>} : vector<8x128xi32>
    %cst = arith.constant 0.000000e+00 : f32
    %6 = vector.broadcast %cst : f32 to vector<8x128xf32>
    %7 = vector.extract_strided_slice %4 {offsets = [0, 0], sizes = [8, 1], strides = [1, 1]} : vector<8x4xi32> to vector<8x1xi32>
    %c0_i32_1 = arith.constant 0 : i32
    %8 = vector.broadcast %c0_i32_1 : i32 to vector<8x1xi32>
    %9 = arith.addi %7, %8 : vector<8x1xi32>
    %10 = vector.broadcast %9 : vector<8x1xi32> to vector<8x128xi32>
    %11 = arith.cmpi eq, %5, %10 : vector<8x128xi32>
    %12 = arith.extui %11 : vector<8x128xi1> to vector<8x128xi32>
    %13 = arith.sitofp %12 : vector<8x128xi32> to vector<8x128xf32>
    %14 = arith.addf %6, %13 : vector<8x128xf32>
    %15 = vector.extract_strided_slice %4 {offsets = [0, 1], sizes = [8, 1], strides = [1, 1]} : vector<8x4xi32> to vector<8x1xi32>
    %c32_i32 = arith.constant 32 : i32
    %16 = vector.broadcast %c32_i32 : i32 to vector<8x1xi32>
    %17 = arith.addi %15, %16 : vector<8x1xi32>
    %18 = vector.broadcast %17 : vector<8x1xi32> to vector<8x128xi32>
    %19 = arith.cmpi eq, %5, %18 : vector<8x128xi32>
    %20 = arith.extui %19 : vector<8x128xi1> to vector<8x128xi32>
    %21 = arith.sitofp %20 : vector<8x128xi32> to vector<8x128xf32>
    %22 = arith.addf %14, %21 : vector<8x128xf32>
    %23 = vector.extract_strided_slice %4 {offsets = [0, 2], sizes = [8, 1], strides = [1, 1]} : vector<8x4xi32> to vector<8x1xi32>
    %c64_i32 = arith.constant 64 : i32
    %24 = vector.broadcast %c64_i32 : i32 to vector<8x1xi32>
    %25 = arith.addi %23, %24 : vector<8x1xi32>
    %26 = vector.broadcast %25 : vector<8x1xi32> to vector<8x128xi32>
    %27 = arith.cmpi eq, %5, %26 : vector<8x128xi32>
    %28 = arith.extui %27 : vector<8x128xi1> to vector<8x128xi32>
    %29 = arith.sitofp %28 : vector<8x128xi32> to vector<8x128xf32>
    %30 = arith.addf %22, %29 : vector<8x128xf32>
    %31 = vector.extract_strided_slice %4 {offsets = [0, 3], sizes = [8, 1], strides = [1, 1]} : vector<8x4xi32> to vector<8x1xi32>
    %c96_i32 = arith.constant 96 : i32
    %32 = vector.broadcast %c96_i32 : i32 to vector<8x1xi32>
    %33 = arith.addi %31, %32 : vector<8x1xi32>
    %34 = vector.broadcast %33 : vector<8x1xi32> to vector<8x128xi32>
    %35 = arith.cmpi eq, %5, %34 : vector<8x128xi32>
    %36 = arith.extui %35 : vector<8x128xi1> to vector<8x128xi32>
    %37 = arith.sitofp %36 : vector<8x128xi32> to vector<8x128xf32>
    %38 = arith.addf %30, %37 : vector<8x128xf32>
    %c0_2 = arith.constant 0 : index
    %c0_3 = arith.constant 0 : index
    %39 = vector.load %arg2[%c0_2, %c0_3] : memref<128x128xf32, #tpu.memory_space<vmem>>, vector<128x128xf32>
    %cst_4 = arith.constant dense<0.000000e+00> : vector<8x128xf32>
    %40 = tpu.matmul %38, %39, %cst_4 {dimension_numbers = #tpu.dot_dimension_numbers<[1], [0], [0], [1], [0, 0, 1, 1], [], []>} : vector<8x128xf32>, vector<128x128xf32>, vector<8x128xf32> -> vector<8x128xf32>
    %c0_5 = arith.constant 0 : index
    %c0_6 = arith.constant 0 : index
    %41 = vector.load %arg3[%c0_5, %c0_6] : memref<8x128xf32, #tpu.memory_space<vmem>>, vector<8x128xf32>
    tpu.vector_store %arg3[%c0_5, %c0_6], %40 {strides = array<i32>} : memref<8x128xf32, #tpu.memory_space<vmem>>, vector<8x128xf32>,
    return
  }
  func.func @transform_0(%arg0: i32) -> (i32, i32) {
    %c0_i32 = arith.constant 0 : i32
    %c0_i32_0 = arith.constant 0 : i32
    return %arg0, %c0_i32 : i32, i32
  }
  func.func @transform_1(%arg0: i32) -> (i32, i32) {
    %c0_i32 = arith.constant 0 : i32
    %c0_i32_0 = arith.constant 0 : i32
    %c0_i32_1 = arith.constant 0 : i32
    return %c0_i32, %c0_i32_0 : i32, i32
  }
  func.func @transform_2(%arg0: i32) -> (i32, i32) {
    %c0_i32 = arith.constant 0 : i32
    %c0_i32_0 = arith.constant 0 : i32
    return %arg0, %c0_i32 : i32, i32
  }
}

</mosaic_0001>

<llo_original>
// kernel: tpu_custom_call.1
$region0: #{tpu_custom_call.1}
  #allocation0 [shape = 'u32[]', space=smem, size = 0x4, offset = 0x4, fixed_abs, tag = 'smem constant byte address 0x4 - core index']
  #allocation1 [shape = 'u32[144,128]{1,0:T(1,128)}', space=vmem, size = 0x12000, scoped, tag = 'internal scratch']
  %s0 = inlined_call_operand.vmem [shape: s32[8,4], index: 0, kind: input, shape index: {}]
  %s1 = inlined_call_operand.hbm [shape: f32[128,128], index: 1, kind: input, shape index: {}]
  %s2 = inlined_call_operand.hbm [shape: f32[8,128], index: 2, kind: output, shape index: {}]
  %s3 = sld [smem:[#allocation0]]
  $region22: #{tpu_custom_call.1} parent=0
    _
  %s5 = ssub.s32 1, %s3
  %s6 = scalar_select 0, %s5, %s3
  $region1: #{tpu_custom_call.1} parent=0
    #allocation2 [shape = 'u8[65536]{0}', space=vmem, size = 0x10000, scoped, tag = 'input window, operand 1, single buffered']
    #allocation3 [shape = 's32[1]{0}', space=sflag, size = 0x4, scoped, tag = 'scoped memory for tpu_custom_call.1']
    #allocation4 [shape = 's32[1]{0}', space=sflag, size = 0x4, scoped, tag = 'scoped memory for tpu_custom_call.1']
    #allocation5 [shape = 'u8[4096]{0}', space=vmem, size = 0x1000, scoped, tag = 'output window, operand 0, single buffered']
    %7 = vsyncpa [#allocation3], 0
    %8 = vsyncpa [#allocation4], 0
    // Predicated region
    $region2: #{tpu_custom_call.1} parent=1 // pred_check
      _
    $region3: #{tpu_custom_call.1} parent=1 // pred_check_branch
      %10 = sbr.rel (0) target = $region5
    $region4: #{tpu_custom_call.1} parent=1 // pred_region
      _
    $region5: #{tpu_custom_call.1} parent=1 // pred_fallthru
      _
    // Predicated region
    $region6: #{tpu_custom_call.1} parent=1 // pred_check
      _
    $region7: #{tpu_custom_call.1} parent=1 // pred_check_branch
      %12 = sbr.rel (0) target = $region9
    $region8: #{tpu_custom_call.1} parent=1 // pred_region
      %s14 = ssub.s32 2048, 2048
      %15 = vsyncadd [#allocation3], %s14
      %s16 = sshll.u32 [#allocation2], 4
      %s17 = int_to_ptr.vmem [resolvable:$true] %s16
      %22 = dma.hbm_to_vmem [thread:$0]  %s1, 2048, %s17, [#allocation3], 128, 128, 8
    $region9: #{tpu_custom_call.1} parent=1 // pred_fallthru
      _
    // Predicated region
    $region10: #{tpu_custom_call.1} parent=1 // pred_check
      _
    $region11: #{tpu_custom_call.1} parent=1 // pred_check_branch
      %24 = sbr.rel (0) target = $region13
    $region12: #{tpu_custom_call.1} parent=1 // pred_region
      %25 = dma.done [#allocation3], 2048
    $region13: #{tpu_custom_call.1} parent=1 // pred_fallthru
      _
    %v26 = vld [vmem:[%s0] sm:$0xff]
    %vm27 = vcmp.gt.s32.totalorder %v26, 0
    %v28 = vsel %vm27, %v26, 0
    %vm29 = vcmp.lt.s32.totalorder %v28, 20
    %v30 = vsel %vm29, %v28, 20
    %v31 = vlaneseq
    %v32 = vand.u32 %v31, 127
    %33 = vset.pattern.permute.xlu0 0
    %34 = vperm.xlu0 %33, %v30
    %v35 = vpop.permute.xlu0 %34
    %vm36 = vcmp.eq.s32.totalorder %v32, %v35
    %v37 = vsel %vm36, 1, 0
    %v38 = vcvt.s32.f32 %v37
    %v39 = vadd.f32 %v38, 0.0
    %v40 = vadd.s32 %v30, 32
    %41 = vset.pattern.permute.xlu0 1
    %42 = vperm.xlu0 %41, %v40
    %v43 = vpop.permute.xlu0 %42
    %vm44 = vcmp.eq.s32.totalorder %v32, %v43
    %v45 = vsel %vm44, 1, 0
    %v46 = vcvt.s32.f32 %v45
    %v47 = vadd.f32 %v39, %v46
    %v48 = vadd.s32 %v30, 64
    %49 = vset.pattern.permute.xlu0 2
    %50 = vperm.xlu0 %49, %v48
    %v51 = vpop.permute.xlu0 %50
    %vm52 = vcmp.eq.s32.totalorder %v32, %v51
    %v53 = vsel %vm52, 1, 0
    %v54 = vcvt.s32.f32 %v53
    %v55 = vadd.f32 %v47, %v54
    %v56 = vadd.s32 %v30, 96
    %57 = vset.pattern.permute.xlu0 3
    %58 = vperm.xlu0 %57, %v56
    %v59 = vpop.permute.xlu0 %58
    %vm60 = vcmp.eq.s32.totalorder %v32, %v59
    %v61 = vsel %vm60, 1, 0
    %v62 = vcvt.s32.f32 %v61
    %v63 = vadd.f32 %v55, %v62
    %v64 = vld [vmem:[#allocation2] sm:$0xff]
    %v65 = vld [vmem:[#allocation2 + $0x8] sm:$0xff]
    %v66 = vld [vmem:[#allocation2 + $0x10] sm:$0xff]
    %v67 = vld [vmem:[#allocation2 + $0x18] sm:$0xff]
    %v68 = vld [vmem:[#allocation2 + $0x20] sm:$0xff]
    %v69 = vld [vmem:[#allocation2 + $0x28] sm:$0xff]
    %v70 = vld [vmem:[#allocation2 + $0x30] sm:$0xff]
    %v71 = vld [vmem:[#allocation2 + $0x38] sm:$0xff]
    %v72 = vld [vmem:[#allocation2 + $0x40] sm:$0xff]
    %v73 = vld [vmem:[#allocation2 + $0x48] sm:$0xff]
    %v74 = vld [vmem:[#allocation2 + $0x50] sm:$0xff]
    %v75 = vld [vmem:[#allocation2 + $0x58] sm:$0xff]
    %v76 = vld [vmem:[#allocation2 + $0x60] sm:$0xff]
    %v77 = vld [vmem:[#allocation2 + $0x68] sm:$0xff]
    %v78 = vld [vmem:[#allocation2 + $0x70] sm:$0xff]
    %v79 = vld [vmem:[#allocation2 + $0x78] sm:$0xff]
    %80 = vmatprep.subr.mxu0 0.0
    %81 = vmatpush1.msra.mxu0 %v64
    %82 = vmatprep.subr.mxu0 0.0
    %83 = vmatpush1.msra.mxu0 %v65
    %84 = vmatprep.subr.mxu0 0.0
    %85 = vmatpush1.msra.mxu0 %v66
    %86 = vmatprep.subr.mxu0 0.0
    %87 = vmatpush1.msra.mxu0 %v67
    %88 = vmatprep.subr.mxu0 0.0
    %89 = vmatpush1.msra.mxu0 %v68
    %90 = vmatprep.subr.mxu0 0.0
    %91 = vmatpush1.msra.mxu0 %v69
    %92 = vmatprep.subr.mxu0 0.0
    %93 = vmatpush1.msra.mxu0 %v70
    %94 = vmatprep.subr.mxu0 0.0
    %95 = vmatpush1.msra.mxu0 %v71
    %96 = vmatprep.subr.mxu0 0.0
    %97 = vmatpush1.msra.mxu0 %v72
    %98 = vmatprep.subr.mxu0 0.0
    %99 = vmatpush1.msra.mxu0 %v73
    %100 = vmatprep.subr.mxu0 0.0
    %101 = vmatpush1.msra.mxu0 %v74
    %102 = vmatprep.subr.mxu0 0.0
    %103 = vmatpush1.msra.mxu0 %v75
    %104 = vmatprep.subr.mxu0 0.0
    %105 = vmatpush1.msra.mxu0 %v76
    %106 = vmatprep.subr.mxu0 0.0
    %107 = vmatpush1.msra.mxu0 %v77
    %108 = vmatprep.subr.mxu0 0.0
    %109 = vmatpush1.msra.mxu0 %v78
    %110 = vmatprep.subr.mxu0 0.0
    %111 = vmatpush1.msra.mxu0 %v79
    %112 = vmatprep.subr.mxu0 0.0
    %113 = vmatpush1.msra.mxu0 0.0
    %114 = vmatprep.subr.mxu0 0.0
    %115 = vmatpush1.msra.mxu0 0.0
    %116 = vmatprep.subr.mxu0 0.0
    %117 = vmatpush1.msra.mxu0 0.0
    %118 = vmatprep.subr.mxu0 0.0
    %119 = vmatpush1.msra.mxu0 0.0
    %120 = vmatprep.subr.mxu0 0.0
    %121 = vmatpush1.msra.mxu0 0.0
    %122 = vmatprep.subr.mxu0 0.0
    %123 = vmatpush1.msra.mxu0 0.0
    %124 = vmatprep.subr.mxu0 0.0
    %125 = vmatpush1.msra.mxu0 0.0
    %126 = vmatprep.subr.mxu0 0.0
    %127 = vmatpush1.msra.mxu0 0.0
    %128 = vmatprep.subr.mxu0 0.0
    %129 = vmatpush1.msra.mxu0 0.0
    %130 = vmatprep.subr.mxu0 0.0
    %131 = vmatpush1.msra.mxu0 0.0
    %132 = vmatprep.subr.mxu0 0.0
    %133 = vmatpush1.msra.mxu0 0.0
    %134 = vmatprep.subr.mxu0 0.0
    %135 = vmatpush1.msra.mxu0 0.0
    %136 = vmatprep.subr.mxu0 0.0
    %137 = vmatpush1.msra.mxu0 0.0
    %138 = vmatprep.subr.mxu0 0.0
    %139 = vmatpush1.msra.mxu0 0.0
    %140 = vmatprep.subr.mxu0 0.0
    %141 = vmatpush1.msra.mxu0 0.0
    %142 = vmatprep.subr.mxu0 0.0
    %143 = vmatpush1.msra.mxu0 0.0
    %144 = vmatprep.mubr.f32.mxu0 0.0
    %145 = vmatmul.mubr.f32.gmra.mrb[0].mxu0 %v63
    %v146 = vpop.f32.mrb[0].mxu0
    %v147 = vadd.f32 0.0, %v146
    %v148 = vpop.f32.mrb[0].mxu0
    %149 = vdwg.mxu0
    %150 = vst [vmem:[#allocation5] sm:$0xff] %v147
    // Predicated region
    $region14: #{tpu_custom_call.1} parent=1 // pred_check
      _
    $region15: #{tpu_custom_call.1} parent=1 // pred_check_branch
      %152 = sbr.rel (0) target = $region17
    $region16: #{tpu_custom_call.1} parent=1 // pred_region
      %s154 = ssub.s32 128, 128
      %155 = vsyncadd [#allocation4], %s154
      %s157 = sshll.u32 [#allocation5], 4
      %s158 = int_to_ptr.vmem [resolvable:$true] %s157
      %160 = dma.vmem_to_hbm [thread:$0]  %s158, 128, %s2, [#allocation4]
    $region17: #{tpu_custom_call.1} parent=1 // pred_fallthru
      _
    // Predicated region
    $region18: #{tpu_custom_call.1} parent=1 // pred_check
      _
    $region19: #{tpu_custom_call.1} parent=1 // pred_check_branch
      %162 = sbr.rel (0) target = $region21
    $region20: #{tpu_custom_call.1} parent=1 // pred_region
      %163 = dma.done [#allocation4], 128
    $region21: #{tpu_custom_call.1} parent=1 // pred_fallthru
      _
    %164 = vsyncpa [#allocation3], 1
    %165 = vsyncpa [#allocation4], 1

</llo_original>
